<compile_context>
chip_gen: v7x
topology: tpu7x:2x2x1
jax: 0.10.0
libtpu: 0.0.40
codegen_flags: <defaults>
</compile_context>

<pallas_src>
import jax
import jax.numpy as jnp
from jax.experimental import pallas as pl
from jax.experimental.pallas import tpu as pltpu

EPS = 1e-8
_HAS_BUFFERED = hasattr(pl, "Buffered")


def _round_up(n, m):
    return ((n + m - 1) // m) * m


# --------------------------------------------------------------------------- #
# Kernel
# --------------------------------------------------------------------------- #
def _gru_gating_kernel(x_ref, w_ref, b_rz_ref, b_in_ref, b_hn_ref, o_ref):
    """One row-tile of GRUGating.

    x_ref   : (tm, dim)     input rows (also the GRU hidden state)
    w_ref   : (dim, 6*dg)   [g*W_ir | g*W_iz | g*W_in | W_hr | W_hz | W_hn]^T,
                            per-gate columns zero-padded to dg, compute dtype
    b_rz_ref: (1, 2*dg)     [b_ir + b_hr | b_iz + b_hz]
    b_in_ref: (1, dg)       b_in
    b_hn_ref: (1, dg)       b_hn
    o_ref   : (tm, dim)     output rows
    """
    x = x_ref[...].astype(jnp.float32)
    dim = x.shape[-1]
    dg = w_ref.shape[-1] // 6

    # RMSNorm scale via rsqrt (EUP slot): 1/clamp(sqrt(mean(x^2)), eps)
    ms = jnp.sum(x * x, axis=-1, keepdims=True) * (1.0 / dim)
    inv = jax.lax.rsqrt(jnp.maximum(ms, EPS * EPS))                 # (tm, 1)

    # Single fused MXU matmul; g is folded into the first 3*dg weight columns,
    # so  inv * (x @ (diag(g) W_i)) == RMSNorm(x) @ W_i  and the hidden path
    # shares the same (already-cast) LHS.
    cdt = w_ref.dtype
    res = jnp.dot(x.astype(cdt), w_ref[...],
                  preferred_element_type=jnp.float32)               # (tm, 6*dg)

    gi = res[:, : 3 * dg] * inv                                     # input-path gates
    gh = res[:, 3 * dg:]                                            # hidden-path gates

    # r and z share one sigmoid over a lane-aligned (tm, 2*dg) slab.
    rz = jax.nn.sigmoid(gi[:, : 2 * dg] + gh[:, : 2 * dg] + b_rz_ref[...])
    r = rz[:, :dg]
    z = rz[:, dg:]
    n = jnp.tanh(gi[:, 2 * dg:] + b_in_ref[...]
                 + r * (gh[:, 2 * dg:] + b_hn_ref[...]))

    # Drop the lane padding (a no-op when dim % 128 == 0) and gate.
    n = n[:, :dim]
    z = z[:, :dim]
    out = n + z * (x - n)                                           # == (1-z)*n + z*x
    o_ref[...] = out.astype(o_ref.dtype)


# --------------------------------------------------------------------------- #
# One-time parameter preparation
# --------------------------------------------------------------------------- #
def prepare_params(params, dim, compute_dtype=jnp.bfloat16):
    """One-time layout transform (runs once, outside the per-call hot path).

    * transpose PyTorch GRUCell weights ((3*dim, dim), gate order r,z,n) to
      (dim, 3*dim) so the kernel computes row-major  x @ W  on the MXU,
    * fold the RMSNorm gain g into the input-path weights (diag(g) @ W_i),
    * zero-pad every per-gate column block to dg = round_up(dim, 128) so gate
      slices land on lane-tile boundaries,
    * concatenate [g*W_i | W_h] into a single (dim, 6*dg) matrix (one matmul),
    * pre-combine the r/z biases.
    """
    dg = _round_up(dim, 128)
    g = jnp.asarray(params["g"], jnp.float32)                            # (dim,)
    w_i = jnp.asarray(params["weight_ih"], jnp.float32).T * g[:, None]   # (dim, 3*dim)
    w_h = jnp.asarray(params["weight_hh"], jnp.float32).T                # (dim, 3*dim)
    b_i = jnp.asarray(params["bias_ih"], jnp.float32)                    # (3*dim,)
    b_h = jnp.asarray(params["bias_hh"], jnp.float32)

    def pad_gate_cols(w):  # (dim, 3*dim) -> (dim, 3*dg), zero-padded per gate
        gates = [jnp.pad(w[:, k * dim:(k + 1) * dim], ((0, 0), (0, dg - dim)))
                 for k in range(3)]
        return jnp.concatenate(gates, axis=1)

    w = jnp.concatenate([pad_gate_cols(w_i), pad_gate_cols(w_h)],
                        axis=1).astype(compute_dtype)                    # (dim, 6*dg)

    def pad_vec(v):  # (dim,) -> (dg,)
        return jnp.pad(v, (0, dg - dim))

    b_ir, b_iz, b_in = b_i[:dim], b_i[dim:2 * dim], b_i[2 * dim:]
    b_hr, b_hz, b_hn = b_h[:dim], b_h[dim:2 * dim], b_h[2 * dim:]
    b_rz = jnp.concatenate([pad_vec(b_ir + b_hr),
                            pad_vec(b_iz + b_hz)]).reshape(1, 2 * dg)
    return {
        "w": w,
        "b_rz": b_rz,
        "b_in": pad_vec(b_in).reshape(1, dg),
        "b_hn": pad_vec(b_hn).reshape(1, dg),
    }


# --------------------------------------------------------------------------- #
# VMEM sizing (generation-aware)
# --------------------------------------------------------------------------- #
def _vmem_capacity_bytes():
    try:
        return int(pltpu.get_tpu_info().vmem_capacity_bytes)
    except Exception:
        return 64 << 20          # conservative: fits every generation (v7x per-TC)


def _vmem_estimate(dim, dg, tm, in_itemsize, w_itemsize, weight_buffers):
    w_bytes = weight_buffers * dim * 6 * dg * w_itemsize        # fused weights
    b_bytes = weight_buffers * 4 * dg * 4                       # biases (f32)
    io_bytes = 2 * 2 * tm * dim * in_itemsize                   # x + out, double-buffered
    tmp_bytes = 16 * tm * dg * 4                                # f32 result / gate temporaries
    return int(1.2 * (w_bytes + b_bytes + io_bytes + tmp_bytes)) + (4 << 20)


# --------------------------------------------------------------------------- #
# pallas_call wrapper
# --------------------------------------------------------------------------- #
def _forward(x2, prepped, dim, dg, tm, single_buffer_consts):
    padded = x2.shape[0]
    w, b_rz, b_in, b_hn = prepped["w"], prepped["b_rz"], prepped["b_in"], prepped["b_hn"]

    use_buffered = single_buffer_consts and _HAS_BUFFERED
    weight_buffers = 1 if use_buffered else 2
    est = _vmem_estimate(dim, dg, tm, jnp.dtype(x2.dtype).itemsize,
                         jnp.dtype(w.dtype).itemsize, weight_buffers)
    cap = max(int(0.8 * _vmem_capacity_bytes()), 32 << 20)
    vmem_limit = min(max(est, 32 << 20), cap)

    row_spec = pl.BlockSpec((tm, dim), lambda i: (i, 0))

    def const_spec(shape):
        # Constant blocks never change across grid steps; single-buffer them so
        # resident weights don't cost 2x VMEM (key for large dim on v7x).
        if use_buffered:
            return pl.BlockSpec(shape, lambda i: (0, 0),
                                pipeline_mode=pl.Buffered(1))
        return pl.BlockSpec(shape, lambda i: (0, 0))

    return pl.pallas_call(
        _gru_gating_kernel,
        out_shape=jax.ShapeDtypeStruct((padded, dim), x2.dtype),
        grid_spec=pltpu.PrefetchScalarGridSpec(
            num_scalar_prefetch=0,
            grid=(padded // tm,),
            in_specs=[
                row_spec,                       # x rows
                const_spec((dim, 6 * dg)),      # fused [g*W_i | W_h]
                const_spec((1, 2 * dg)),        # b_rz
                const_spec((1, dg)),            # b_in
                const_spec((1, dg)),            # b_hn
            ],
            out_specs=row_spec,
        ),
        compiler_params=pltpu.CompilerParams(
            dimension_semantics=("parallel",),
            vmem_limit_bytes=vmem_limit,
        ),
    )(x2, w, b_rz, b_in, b_hn)


def gru_gating(x, prepped, *, tm=256):
    """x: (..., dim). `prepped` = prepare_params(raw_params, dim). Same shape/dtype out."""
    shape = x.shape
    dim = shape[-1]
    dg = prepped["w"].shape[-1] // 6
    x2 = x.reshape(-1, dim)
    n_rows = x2.shape[0]

    # Row tile: multiple of 8 sublanes, MXU-shaped by default; shrink for tiny
    # inputs, and shrink further if the VMEM estimate exceeds this generation's
    # capacity (v7x has 64 MiB/TC vs 128 MiB on v5e/v6e).
    tm_eff = max(8, min(_round_up(tm, 8), _round_up(n_rows, 8)))
    cap = max(int(0.8 * _vmem_capacity_bytes()), 32 << 20)
    w_isz = jnp.dtype(prepped["w"].dtype).itemsize
    in_isz = jnp.dtype(x.dtype).itemsize
    while (tm_eff > 64
           and _vmem_estimate(dim, dg, tm_eff, in_isz, w_isz, 1) > cap):
        tm_eff = max(64, _round_up(tm_eff // 2, 8))

    padded = _round_up(n_rows, tm_eff)
    if padded != n_rows:
        # Zero-padded tail rows: RMSNorm clamp keeps them finite; sliced off below.
        x2 = jnp.pad(x2, ((0, padded - n_rows), (0, 0)))

    try:
        out2 = _forward(x2, prepped, dim, dg, tm_eff, single_buffer_consts=True)
    except Exception:
        # Fallback if this JAX/Mosaic build rejects pipeline_mode=pl.Buffered(1).
        out2 = _forward(x2, prepped, dim, dg, tm_eff, single_buffer_consts=False)

    return out2[:n_rows].reshape(shape)


# --------------------------------------------------------------------------- #
# Params init + pure-JAX reference
# --------------------------------------------------------------------------- #
def init_params(key, dim):
    """Deterministic init matching nn.GRUCell shapes (uniform +-1/sqrt(dim))
    and RMSNorm gain (ones)."""
    k1, k2, k3, k4 = jax.random.split(key, 4)
    bound = 1.0 / (dim ** 0.5)
    return {
        "g": jnp.ones((dim,), jnp.float32),
        "weight_ih": jax.random.uniform(k1, (3 * dim, dim), jnp.float32, -bound, bound),
        "weight_hh": jax.random.uniform(k2, (3 * dim, dim), jnp.float32, -bound, bound),
        "bias_ih": jax.random.uniform(k3, (3 * dim,), jnp.float32, -bound, bound),
        "bias_hh": jax.random.uniform(k4, (3 * dim,), jnp.float32, -bound, bound),
    }


def _reference(x, params):
    """Pure-JAX f32 reference of the same math (PyTorch GRUGating forward)."""
    dim = x.shape[-1]
    x2 = x.reshape(-1, dim).astype(jnp.float32)
    norm = jnp.linalg.norm(x2, axis=-1, keepdims=True) * dim ** -0.5
    y = x2 / jnp.maximum(norm, EPS) * params["g"]
    gi = y @ params["weight_ih"].T + params["bias_ih"]
    gh = x2 @ params["weight_hh"].T + params["bias_hh"]
    i_r, i_z, i_n = jnp.split(gi, 3, axis=-1)
    h_r, h_z, h_n = jnp.split(gh, 3, axis=-1)
    r = jax.nn.sigmoid(i_r + h_r)
    z = jax.nn.sigmoid(i_z + h_z)
    n = jnp.tanh(i_n + r * h_n)
    out = (1.0 - z) * n + z * x2
    return out.reshape(x.shape).astype(x.dtype)


if __name__ == "__main__":
    batch, seq, dim = 2, 8, 32
    key = jax.random.PRNGKey(0)
    kx, kp = jax.random.split(key)
    x = jax.random.normal(kx, (batch, seq, dim), jnp.float32)
    params = init_params(kp, dim)
    prepped = prepare_params(params, dim)     # one-time fold / pad / bf16 transform

    out = gru_gating(x, prepped)
    out = jax.block_until_ready(out)

    ref = _reference(x, params)
    assert out.shape == x.shape and out.dtype == x.dtype
    # bf16 matmul inputs with f32 accumulation vs the pure-f32 reference.
    err = float(jnp.max(jnp.abs(out - ref)))
    assert jnp.allclose(out, ref, atol=5e-2, rtol=5e-2), err

    print("KERNEL_OK")
</pallas_src>

<mosaic_0001>
module attributes {stable_mosaic.version = 11 : i64} {
  func.func @_gru_gating_kernel(%arg0: i32, %arg1: memref<16x32xf32, #tpu.memory_space<vmem>>, %arg2: memref<32x768xbf16, #tpu.memory_space<vmem>>, %arg3: memref<1x256xf32, #tpu.memory_space<vmem>>, %arg4: memref<1x128xf32, #tpu.memory_space<vmem>>, %arg5: memref<1x128xf32, #tpu.memory_space<vmem>>, %arg6: memref<16x32xf32, #tpu.memory_space<vmem>>) attributes {dimension_semantics = [#tpu.dimension_semantics<parallel>], iteration_bounds = array<i64: 1>, scalar_prefetch = 0 : i64, scratch_operands = 0 : i64, tpu.core_type = #tpu.core_type<tc>, window_params = [{transform_indices = @transform_0, window_bounds = array<i64: 16, 32>}, {pipeline_mode = #tpu.pipeline_mode<synchronous>, transform_indices = @transform_1, window_bounds = array<i64: 32, 768>}, {pipeline_mode = #tpu.pipeline_mode<synchronous>, transform_indices = @transform_2, window_bounds = array<i64: 1, 256>}, {pipeline_mode = #tpu.pipeline_mode<synchronous>, transform_indices = @transform_3, window_bounds = array<i64: 1, 128>}, {pipeline_mode = #tpu.pipeline_mode<synchronous>, transform_indices = @transform_4, window_bounds = array<i64: 1, 128>}, {transform_indices = @transform_5, window_bounds = array<i64: 16, 32>}]} {
    %c0 = arith.constant 0 : index
    %c0_0 = arith.constant 0 : index
    %0 = vector.load %arg1[%c0, %c0_0] : memref<16x32xf32, #tpu.memory_space<vmem>>, vector<16x32xf32>
    %1 = arith.mulf %0, %0 : vector<16x32xf32>
    %cst = arith.constant dense<0.000000e+00> : vector<16xf32>
    %2 = vector.multi_reduction <add>, %1, %cst [1] : vector<16x32xf32> to vector<16xf32>
    %3 = vector.shape_cast %2 : vector<16xf32> to vector<16x1xf32>
    %cst_1 = arith.constant 3.125000e-02 : f32
    %4 = vector.broadcast %cst_1 : f32 to vector<16x1xf32>
    %5 = arith.mulf %3, %4 : vector<16x1xf32>
    %cst_2 = arith.constant 1.000000e-16 : f32
    %6 = vector.broadcast %cst_2 : f32 to vector<16x1xf32>
    %7 = arith.maximumf %5, %6 : vector<16x1xf32>
    %8 = math.rsqrt %7 : vector<16x1xf32>
    %9 = arith.truncf %0 : vector<16x32xf32> to vector<16x32xbf16>
    %c0_3 = arith.constant 0 : index
    %c0_4 = arith.constant 0 : index
    %10 = vector.load %arg2[%c0_3, %c0_4] : memref<32x768xbf16, #tpu.memory_space<vmem>>, vector<32x768xbf16>
    %cst_5 = arith.constant dense<0.000000e+00> : vector<16x768xf32>
    %11 = tpu.matmul %9, %10, %cst_5 {dimension_numbers = #tpu.dot_dimension_numbers<[1], [0], [0], [1], [0, 0, 1, 1], [], []>} : vector<16x32xbf16>, vector<32x768xbf16>, vector<16x768xf32> -> vector<16x768xf32>
    %12 = vector.extract_strided_slice %11 {offsets = [0, 0], sizes = [16, 384], strides = [1, 1]} : vector<16x768xf32> to vector<16x384xf32>
    %13 = vector.broadcast %8 : vector<16x1xf32> to vector<16x384xf32>
    %14 = arith.mulf %12, %13 : vector<16x384xf32>
    %15 = vector.extract_strided_slice %11 {offsets = [0, 384], sizes = [16, 384], strides = [1, 1]} : vector<16x768xf32> to vector<16x384xf32>
    %16 = vector.extract_strided_slice %14 {offsets = [0, 0], sizes = [16, 256], strides = [1, 1]} : vector<16x384xf32> to vector<16x256xf32>
    %17 = vector.extract_strided_slice %15 {offsets = [0, 0], sizes = [16, 256], strides = [1, 1]} : vector<16x384xf32> to vector<16x256xf32>
    %18 = arith.addf %16, %17 : vector<16x256xf32>
    %c0_6 = arith.constant 0 : index
    %c0_7 = arith.constant 0 : index
    %19 = vector.load %arg3[%c0_6, %c0_7] : memref<1x256xf32, #tpu.memory_space<vmem>>, vector<1x256xf32>
    %20 = vector.broadcast %19 : vector<1x256xf32> to vector<16x256xf32>
    %21 = arith.addf %18, %20 : vector<16x256xf32>
    %22 = arith.negf %21 : vector<16x256xf32>
    %23 = math.exp %22 : vector<16x256xf32>
    %cst_8 = arith.constant 1.000000e+00 : f32
    %24 = vector.broadcast %cst_8 : f32 to vector<16x256xf32>
    %25 = arith.addf %24, %23 : vector<16x256xf32>
    %26 = arith.divf %24, %25 : vector<16x256xf32>
    %27 = vector.extract_strided_slice %26 {offsets = [0, 0], sizes = [16, 128], strides = [1, 1]} : vector<16x256xf32> to vector<16x128xf32>
    %28 = vector.extract_strided_slice %26 {offsets = [0, 128], sizes = [16, 128], strides = [1, 1]} : vector<16x256xf32> to vector<16x128xf32>
    %29 = vector.extract_strided_slice %14 {offsets = [0, 256], sizes = [16, 128], strides = [1, 1]} : vector<16x384xf32> to vector<16x128xf32>
    %c0_9 = arith.constant 0 : index
    %c0_10 = arith.constant 0 : index
    %30 = vector.load %arg4[%c0_9, %c0_10] : memref<1x128xf32, #tpu.memory_space<vmem>>, vector<1x128xf32>
    %31 = vector.broadcast %30 : vector<1x128xf32> to vector<16x128xf32>
    %32 = arith.addf %29, %31 : vector<16x128xf32>
    %33 = vector.extract_strided_slice %15 {offsets = [0, 256], sizes = [16, 128], strides = [1, 1]} : vector<16x384xf32> to vector<16x128xf32>
    %c0_11 = arith.constant 0 : index
    %c0_12 = arith.constant 0 : index
    %34 = vector.load %arg5[%c0_11, %c0_12] : memref<1x128xf32, #tpu.memory_space<vmem>>, vector<1x128xf32>
    %35 = vector.broadcast %34 : vector<1x128xf32> to vector<16x128xf32>
    %36 = arith.addf %33, %35 : vector<16x128xf32>
    %37 = arith.mulf %27, %36 : vector<16x128xf32>
    %38 = arith.addf %32, %37 : vector<16x128xf32>
    %39 = math.tanh %38 : vector<16x128xf32>
    %40 = vector.extract_strided_slice %39 {offsets = [0, 0], sizes = [16, 32], strides = [1, 1]} : vector<16x128xf32> to vector<16x32xf32>
    %41 = vector.extract_strided_slice %28 {offsets = [0, 0], sizes = [16, 32], strides = [1, 1]} : vector<16x128xf32> to vector<16x32xf32>
    %42 = arith.subf %0, %40 : vector<16x32xf32>
    %43 = arith.mulf %41, %42 : vector<16x32xf32>
    %44 = arith.addf %40, %43 : vector<16x32xf32>
    %c0_13 = arith.constant 0 : index
    %c0_14 = arith.constant 0 : index
    %45 = vector.load %arg6[%c0_13, %c0_14] : memref<16x32xf32, #tpu.memory_space<vmem>>, vector<16x32xf32>
    tpu.vector_store %arg6[%c0_13, %c0_14], %44 {strides = array<i32>} : memref<16x32xf32, #tpu.memory_space<vmem>>, vector<16x32xf32>,
    return
  }
  func.func @transform_0(%arg0: i32) -> (i32, i32) {
    %c0_i32 = arith.constant 0 : i32
    %c0_i32_0 = arith.constant 0 : i32
    return %arg0, %c0_i32 : i32, i32
  }
  func.func @transform_1(%arg0: i32) -> (i32, i32) {
    %c0_i32 = arith.constant 0 : i32
    %c0_i32_0 = arith.constant 0 : i32
    %c0_i32_1 = arith.constant 0 : i32
    return %c0_i32, %c0_i32_0 : i32, i32
  }
  func.func @transform_2(%arg0: i32) -> (i32, i32) {
    %c0_i32 = arith.constant 0 : i32
    %c0_i32_0 = arith.constant 0 : i32
    %c0_i32_1 = arith.constant 0 : i32
    return %c0_i32, %c0_i32_0 : i32, i32
  }
  func.func @transform_3(%arg0: i32) -> (i32, i32) {
    %c0_i32 = arith.constant 0 : i32
    %c0_i32_0 = arith.constant 0 : i32
    %c0_i32_1 = arith.constant 0 : i32
    return %c0_i32, %c0_i32_0 : i32, i32
  }
  func.func @transform_4(%arg0: i32) -> (i32, i32) {
    %c0_i32 = arith.constant 0 : i32
    %c0_i32_0 = arith.constant 0 : i32
    %c0_i32_1 = arith.constant 0 : i32
    return %c0_i32, %c0_i32_0 : i32, i32
  }
  func.func @transform_5(%arg0: i32) -> (i32, i32) {
    %c0_i32 = arith.constant 0 : i32
    %c0_i32_0 = arith.constant 0 : i32
    return %arg0, %c0_i32 : i32, i32
  }
}

module attributes {stable_mosaic.version = 11 : i64} {
  func.func @_gru_gating_kernel(%arg0: i32, %arg1: memref<16x32xf32, #tpu.memory_space<vmem>>, %arg2: memref<32x768xbf16, #tpu.memory_space<vmem>>, %arg3: memref<1x256xf32, #tpu.memory_space<vmem>>, %arg4: memref<1x128xf32, #tpu.memory_space<vmem>>, %arg5: memref<1x128xf32, #tpu.memory_space<vmem>>, %arg6: memref<16x32xf32, #tpu.memory_space<vmem>>) attributes {dimension_semantics = [#tpu.dimension_semantics<parallel>], iteration_bounds = array<i64: 1>, scalar_prefetch = 0 : i64, scratch_operands = 0 : i64, tpu.core_type = #tpu.core_type<tc>, window_params = [{transform_indices = @transform_0, window_bounds = array<i64: 16, 32>}, {pipeline_mode = #tpu.pipeline_mode<synchronous>, transform_indices = @transform_1, window_bounds = array<i64: 32, 768>}, {pipeline_mode = #tpu.pipeline_mode<synchronous>, transform_indices = @transform_2, window_bounds = array<i64: 1, 256>}, {pipeline_mode = #tpu.pipeline_mode<synchronous>, transform_indices = @transform_3, window_bounds = array<i64: 1, 128>}, {pipeline_mode = #tpu.pipeline_mode<synchronous>, transform_indices = @transform_4, window_bounds = array<i64: 1, 128>}, {transform_indices = @transform_5, window_bounds = array<i64: 16, 32>}]} {
    %c0 = arith.constant 0 : index
    %c0_0 = arith.constant 0 : index
    %0 = vector.load %arg1[%c0, %c0_0] : memref<16x32xf32, #tpu.memory_space<vmem>>, vector<16x32xf32>
    %1 = arith.mulf %0, %0 : vector<16x32xf32>
    %cst = arith.constant dense<0.000000e+00> : vector<16xf32>
    %2 = vector.multi_reduction <add>, %1, %cst [1] : vector<16x32xf32> to vector<16xf32>
    %3 = vector.shape_cast %2 : vector<16xf32> to vector<16x1xf32>
    %cst_1 = arith.constant 3.125000e-02 : f32
    %4 = vector.broadcast %cst_1 : f32 to vector<16x1xf32>
    %5 = arith.mulf %3, %4 : vector<16x1xf32>
    %cst_2 = arith.constant 1.000000e-16 : f32
    %6 = vector.broadcast %cst_2 : f32 to vector<16x1xf32>
    %7 = arith.maximumf %5, %6 : vector<16x1xf32>
    %8 = math.rsqrt %7 : vector<16x1xf32>
    %9 = arith.truncf %0 : vector<16x32xf32> to vector<16x32xbf16>
    %c0_3 = arith.constant 0 : index
    %c0_4 = arith.constant 0 : index
    %10 = vector.load %arg2[%c0_3, %c0_4] : memref<32x768xbf16, #tpu.memory_space<vmem>>, vector<32x768xbf16>
    %cst_5 = arith.constant dense<0.000000e+00> : vector<16x768xf32>
    %11 = tpu.matmul %9, %10, %cst_5 {dimension_numbers = #tpu.dot_dimension_numbers<[1], [0], [0], [1], [0, 0, 1, 1], [], []>} : vector<16x32xbf16>, vector<32x768xbf16>, vector<16x768xf32> -> vector<16x768xf32>
    %12 = vector.extract_strided_slice %11 {offsets = [0, 0], sizes = [16, 384], strides = [1, 1]} : vector<16x768xf32> to vector<16x384xf32>
    %13 = vector.broadcast %8 : vector<16x1xf32> to vector<16x384xf32>
    %14 = arith.mulf %12, %13 : vector<16x384xf32>
    %15 = vector.extract_strided_slice %11 {offsets = [0, 384], sizes = [16, 384], strides = [1, 1]} : vector<16x768xf32> to vector<16x384xf32>
    %16 = vector.extract_strided_slice %14 {offsets = [0, 0], sizes = [16, 256], strides = [1, 1]} : vector<16x384xf32> to vector<16x256xf32>
    %17 = vector.extract_strided_slice %15 {offsets = [0, 0], sizes = [16, 256], strides = [1, 1]} : vector<16x384xf32> to vector<16x256xf32>
    %18 = arith.addf %16, %17 : vector<16x256xf32>
    %c0_6 = arith.constant 0 : index
    %c0_7 = arith.constant 0 : index
    %19 = vector.load %arg3[%c0_6, %c0_7] : memref<1x256xf32, #tpu.memory_space<vmem>>, vector<1x256xf32>
    %20 = vector.broadcast %19 : vector<1x256xf32> to vector<16x256xf32>
    %21 = arith.addf %18, %20 : vector<16x256xf32>
    %22 = arith.negf %21 : vector<16x256xf32>
    %23 = math.exp %22 : vector<16x256xf32>
    %cst_8 = arith.constant 1.000000e+00 : f32
    %24 = vector.broadcast %cst_8 : f32 to vector<16x256xf32>
    %25 = arith.addf %24, %23 : vector<16x256xf32>
    %26 = arith.divf %24, %25 : vector<16x256xf32>
    %27 = vector.extract_strided_slice %26 {offsets = [0, 0], sizes = [16, 128], strides = [1, 1]} : vector<16x256xf32> to vector<16x128xf32>
    %28 = vector.extract_strided_slice %26 {offsets = [0, 128], sizes = [16, 128], strides = [1, 1]} : vector<16x256xf32> to vector<16x128xf32>
    %29 = vector.extract_strided_slice %14 {offsets = [0, 256], sizes = [16, 128], strides = [1, 1]} : vector<16x384xf32> to vector<16x128xf32>
    %c0_9 = arith.constant 0 : index
    %c0_10 = arith.constant 0 : index
    %30 = vector.load %arg4[%c0_9, %c0_10] : memref<1x128xf32, #tpu.memory_space<vmem>>, vector<1x128xf32>
    %31 = vector.broadcast %30 : vector<1x128xf32> to vector<16x128xf32>
    %32 = arith.addf %29, %31 : vector<16x128xf32>
    %33 = vector.extract_strided_slice %15 {offsets = [0, 256], sizes = [16, 128], strides = [1, 1]} : vector<16x384xf32> to vector<16x128xf32>
    %c0_11 = arith.constant 0 : index
    %c0_12 = arith.constant 0 : index
    %34 = vector.load %arg5[%c0_11, %c0_12] : memref<1x128xf32, #tpu.memory_space<vmem>>, vector<1x128xf32>
    %35 = vector.broadcast %34 : vector<1x128xf32> to vector<16x128xf32>
    %36 = arith.addf %33, %35 : vector<16x128xf32>
    %37 = arith.mulf %27, %36 : vector<16x128xf32>
    %38 = arith.addf %32, %37 : vector<16x128xf32>
    %39 = math.tanh %38 : vector<16x128xf32>
    %40 = vector.extract_strided_slice %39 {offsets = [0, 0], sizes = [16, 32], strides = [1, 1]} : vector<16x128xf32> to vector<16x32xf32>
    %41 = vector.extract_strided_slice %28 {offsets = [0, 0], sizes = [16, 32], strides = [1, 1]} : vector<16x128xf32> to vector<16x32xf32>
    %42 = arith.subf %0, %40 : vector<16x32xf32>
    %43 = arith.mulf %41, %42 : vector<16x32xf32>
    %44 = arith.addf %40, %43 : vector<16x32xf32>
    %c0_13 = arith.constant 0 : index
    %c0_14 = arith.constant 0 : index
    %45 = vector.load %arg6[%c0_13, %c0_14] : memref<16x32xf32, #tpu.memory_space<vmem>>, vector<16x32xf32>
    tpu.vector_store %arg6[%c0_13, %c0_14], %44 {strides = array<i32>} : memref<16x32xf32, #tpu.memory_space<vmem>>, vector<16x32xf32>,
    return
  }
  func.func @transform_0(%arg0: i32) -> (i32, i32) {
    %c0_i32 = arith.constant 0 : i32
    %c0_i32_0 = arith.constant 0 : i32
    return %arg0, %c0_i32 : i32, i32
  }
  func.func @transform_1(%arg0: i32) -> (i32, i32) {
    %c0_i32 = arith.constant 0 : i32
    %c0_i32_0 = arith.constant 0 : i32
    %c0_i32_1 = arith.constant 0 : i32
    return %c0_i32, %c0_i32_0 : i32, i32
  }
  func.func @transform_2(%arg0: i32) -> (i32, i32) {
    %c0_i32 = arith.constant 0 : i32
    %c0_i32_0 = arith.constant 0 : i32
    %c0_i32_1 = arith.constant 0 : i32
    return %c0_i32, %c0_i32_0 : i32, i32
  }
  func.func @transform_3(%arg0: i32) -> (i32, i32) {
    %c0_i32 = arith.constant 0 : i32
    %c0_i32_0 = arith.constant 0 : i32
    %c0_i32_1 = arith.constant 0 : i32
    return %c0_i32, %c0_i32_0 : i32, i32
  }
  func.func @transform_4(%arg0: i32) -> (i32, i32) {
    %c0_i32 = arith.constant 0 : i32
    %c0_i32_0 = arith.constant 0 : i32
    %c0_i32_1 = arith.constant 0 : i32
    return %c0_i32, %c0_i32_0 : i32, i32
  }
  func.func @transform_5(%arg0: i32) -> (i32, i32) {
    %c0_i32 = arith.constant 0 : i32
    %c0_i32_0 = arith.constant 0 : i32
    return %arg0, %c0_i32 : i32, i32
  }
}

</mosaic_0001>

<llo_original>
// kernel: tpu_custom_call.1
$region0: #{tpu_custom_call.1}
  #allocation0 [shape = 'u32[]', space=smem, size = 0x4, offset = 0x4, fixed_abs, tag = 'smem constant byte address 0x4 - core index']
  #allocation1 [shape = 'u32[144,128]{1,0:T(1,128)}', space=vmem, size = 0x12000, scoped, tag = 'internal scratch']
  %s0 = inlined_call_operand.hbm [shape: f32[16,32], index: 0, kind: input, shape index: {}]
  %s1 = inlined_call_operand.hbm [shape: bf16[32,768], index: 1, kind: input, shape index: {}]
  %s2 = inlined_call_operand.vmem [shape: f32[1,256], index: 2, kind: input, shape index: {}]
  %s3 = inlined_call_operand.vmem [shape: f32[1,128], index: 3, kind: input, shape index: {}]
  %s4 = inlined_call_operand.vmem [shape: f32[1,128], index: 4, kind: input, shape index: {}]
  %s5 = inlined_call_operand.hbm [shape: f32[16,32], index: 5, kind: output, shape index: {}]
  %s6 = sld [smem:[#allocation0]]
  $region38: #{tpu_custom_call.1} parent=0
    _
  %s8 = ssub.s32 1, %s6
  %s9 = scalar_select 0, %s8, %s6
  $region1: #{tpu_custom_call.1} parent=0
    #allocation2 [shape = 'u8[8192]{0}', space=vmem, size = 0x2000, scoped, tag = 'input window, operand 0, single buffered']
    #allocation3 [shape = 's32[1]{0}', space=sflag, size = 0x4, scoped, tag = 'scoped memory for tpu_custom_call.1']
    #allocation4 [shape = 's32[1]{0}', space=sflag, size = 0x4, scoped, tag = 'scoped memory for tpu_custom_call.1']
    #allocation5 [shape = 'u8[49152]{0}', space=vmem, size = 0xc000, scoped, tag = 'input window, operand 1, single buffered']
    #allocation6 [shape = 's32[1]{0}', space=sflag, size = 0x4, scoped, tag = 'scoped memory for tpu_custom_call.1']
    #allocation7 [shape = 'u8[8192]{0}', space=vmem, size = 0x2000, scoped, tag = 'output window, operand 0, single buffered']
    %10 = vsyncpa [#allocation3], 0
    %11 = vsyncpa [#allocation6], 0
    %12 = vsyncpa [#allocation4], 0
    // Predicated region
    $region2: #{tpu_custom_call.1} parent=1 // pred_check
      _
    $region3: #{tpu_custom_call.1} parent=1 // pred_check_branch
      %14 = sbr.rel (0) target = $region5
    $region4: #{tpu_custom_call.1} parent=1 // pred_region
      %s16 = ssub.s32 256, 256
      %17 = vsyncadd [#allocation3], %s16
      %s18 = sshll.u32 [#allocation2], 4
      %s19 = int_to_ptr.vmem [resolvable:$true] %s18
      %24 = dma.hbm_to_vmem [thread:$0]  %s0, 256, %s19, [#allocation3], 128, 128, 8
    $region5: #{tpu_custom_call.1} parent=1 // pred_fallthru
      _
    // Predicated region
    $region6: #{tpu_custom_call.1} parent=1 // pred_check
      _
    $region7: #{tpu_custom_call.1} parent=1 // pred_check_branch
      %26 = sbr.rel (0) target = $region9
    $region8: #{tpu_custom_call.1} parent=1 // pred_region
      %s28 = ssub.s32 1536, 1536
      %29 = vsyncadd [#allocation6], %s28
      %s30 = sshll.u32 [#allocation5], 4
      %s31 = int_to_ptr.vmem [resolvable:$true] %s30
      %36 = dma.hbm_to_vmem [thread:$0]  %s1, 1536, %s31, [#allocation6], 384, 384, 24
    $region9: #{tpu_custom_call.1} parent=1 // pred_fallthru
      _
    // Predicated region
    $region10: #{tpu_custom_call.1} parent=1 // pred_check
      _
    $region11: #{tpu_custom_call.1} parent=1 // pred_check_branch
      %38 = sbr.rel (0) target = $region13
    $region12: #{tpu_custom_call.1} parent=1 // pred_region
      _
    $region13: #{tpu_custom_call.1} parent=1 // pred_fallthru
      _
    // Predicated region
    $region14: #{tpu_custom_call.1} parent=1 // pred_check
      _
    $region15: #{tpu_custom_call.1} parent=1 // pred_check_branch
      %40 = sbr.rel (0) target = $region17
    $region16: #{tpu_custom_call.1} parent=1 // pred_region
      _
    $region17: #{tpu_custom_call.1} parent=1 // pred_fallthru
      _
    // Predicated region
    $region18: #{tpu_custom_call.1} parent=1 // pred_check
      _
    $region19: #{tpu_custom_call.1} parent=1 // pred_check_branch
      %42 = sbr.rel (0) target = $region21
    $region20: #{tpu_custom_call.1} parent=1 // pred_region
      _
    $region21: #{tpu_custom_call.1} parent=1 // pred_fallthru
      _
    // Predicated region
    $region22: #{tpu_custom_call.1} parent=1 // pred_check
      _
    $region23: #{tpu_custom_call.1} parent=1 // pred_check_branch
      %44 = sbr.rel (0) target = $region25
    $region24: #{tpu_custom_call.1} parent=1 // pred_region
      %45 = dma.done [#allocation3], 256
    $region25: #{tpu_custom_call.1} parent=1 // pred_fallthru
      _
    // Predicated region
    $region26: #{tpu_custom_call.1} parent=1 // pred_check
      _
    $region27: #{tpu_custom_call.1} parent=1 // pred_check_branch
      %47 = sbr.rel (0) target = $region29
    $region28: #{tpu_custom_call.1} parent=1 // pred_region
      %48 = dma.done [#allocation6], 1536
    $region29: #{tpu_custom_call.1} parent=1 // pred_fallthru
      _
    %v50 = vld [vmem:[#allocation2] sm:$0xff]
    %v51 = vld [vmem:[#allocation2 + $0x8] sm:$0xff]
    %v52 = vmul.f32 %v50, %v50
    %v53 = vmul.f32 %v51, %v51
    %vm54 = vcmask 261120
    %v55 = vsel %vm54, %v52, 0.0
    %56 = vadd.xlane.f32.xlu0 %v55
    %v57 = vpop.xlane.xlu0 %56
    %v58 = vsel %vm54, %v53, 0.0
    %59 = vadd.xlane.f32.xlu0 %v58
    %v60 = vpop.xlane.xlu0 %59
    %v61 = vmul.f32 %v57, 0.03125
    %v62 = vmul.f32 %v60, 0.03125
    %v63 = vmax.f32 %v61, 1e-16
    %v64 = vmax.f32 %v62, 1e-16
    %v65 = vrsqrt.pop %v63
    %v66 = vrsqrt.pop %v64
    %v67 = vpack.c.bf16 %v51, %v50
    %v68 = vld [vmem:[#allocation5] sm:$0xff]
    %v69 = vld [vmem:[#allocation5 + $0x8] sm:$0xff]
    %v70 = vld [vmem:[#allocation5 + $0x10] sm:$0xff]
    %v71 = vld [vmem:[#allocation5 + $0x18] sm:$0xff]
    %v72 = vld [vmem:[#allocation5 + $0x20] sm:$0xff]
    %v73 = vld [vmem:[#allocation5 + $0x28] sm:$0xff]
    %v74 = vld [vmem:[#allocation5 + $0x30] sm:$0xff]
    %v75 = vld [vmem:[#allocation5 + $0x38] sm:$0xff]
    %v76 = vld [vmem:[#allocation5 + $0x40] sm:$0xff]
    %v77 = vld [vmem:[#allocation5 + $0x48] sm:$0xff]
    %v78 = vld [vmem:[#allocation5 + $0x50] sm:$0xff]
    %v79 = vld [vmem:[#allocation5 + $0x58] sm:$0xff]
    %v92 = vunpack.c.l.b16 %v68
    %v93 = vunpack.c.h.b16 %v68
    %v94 = vunpack.c.l.b16 %v69
    %v95 = vunpack.c.h.b16 %v69
    %v96 = vunpack.c.l.b16 %v70
    %v97 = vunpack.c.h.b16 %v70
    %v98 = vunpack.c.l.b16 %v71
    %v99 = vunpack.c.h.b16 %v71
    %v100 = vunpack.c.l.b16 %v72
    %v101 = vunpack.c.h.b16 %v72
    %v102 = vunpack.c.l.b16 %v73
    %v103 = vunpack.c.h.b16 %v73
    %v104 = vunpack.c.l.b16 %v74
    %v105 = vunpack.c.h.b16 %v74
    %v106 = vunpack.c.l.b16 %v75
    %v107 = vunpack.c.h.b16 %v75
    %v108 = vunpack.c.l.b16 %v76
    %v109 = vunpack.c.h.b16 %v76
    %v110 = vunpack.c.l.b16 %v77
    %v111 = vunpack.c.h.b16 %v77
    %v112 = vunpack.c.l.b16 %v78
    %v113 = vunpack.c.h.b16 %v78
    %v114 = vunpack.c.l.b16 %v79
    %v115 = vunpack.c.h.b16 %v79
    %v116 = vpack.c.b16 %v98, %v92
    %v117 = vpack.c.b16 %v99, %v93
    %v118 = vpack.c.b16 %v100, %v94
    %v119 = vpack.c.b16 %v101, %v95
    %v120 = vpack.c.b16 %v102, %v96
    %v121 = vpack.c.b16 %v103, %v97
    %v122 = vpack.c.b16 %v110, %v104
    %v123 = vpack.c.b16 %v111, %v105
    %v124 = vpack.c.b16 %v112, %v106
    %v125 = vpack.c.b16 %v113, %v107
    %v126 = vpack.c.b16 %v114, %v108
    %v127 = vpack.c.b16 %v115, %v109
    %v141 = vsel %vm54, %v67, 0
    %143 = vmatprep.subr.bf16.mxu0 %v117
    %144 = vmatpush1.bf16.msra.mxu0 %v116
    %145 = vmatprep.subr.bf16.mxu0 %v123
    %146 = vmatpush1.bf16.msra.mxu0 %v122
    %147 = vmatprep.subr.bf16.mxu0 0
    %148 = vmatpush1.bf16.msra.mxu0 0
    %149 = vmatprep.subr.bf16.mxu0 0
    %150 = vmatpush1.bf16.msra.mxu0 0
    %151 = vmatprep.subr.bf16.mxu0 0
    %152 = vmatpush1.bf16.msra.mxu0 0
    %153 = vmatprep.subr.bf16.mxu0 0
    %154 = vmatpush1.bf16.msra.mxu0 0
    %155 = vmatprep.subr.bf16.mxu0 0
    %156 = vmatpush1.bf16.msra.mxu0 0
    %157 = vmatprep.subr.bf16.mxu0 0
    %158 = vmatpush1.bf16.msra.mxu0 0
    %159 = vmatprep.subr.bf16.mxu0 0
    %160 = vmatpush1.bf16.msra.mxu0 0
    %161 = vmatprep.subr.bf16.mxu0 0
    %162 = vmatpush1.bf16.msra.mxu0 0
    %163 = vmatprep.subr.bf16.mxu0 0
    %164 = vmatpush1.bf16.msra.mxu0 0
    %165 = vmatprep.subr.bf16.mxu0 0
    %166 = vmatpush1.bf16.msra.mxu0 0
    %167 = vmatprep.subr.bf16.mxu0 0
    %168 = vmatpush1.bf16.msra.mxu0 0
    %169 = vmatprep.subr.bf16.mxu0 0
    %170 = vmatpush1.bf16.msra.mxu0 0
    %171 = vmatprep.subr.bf16.mxu0 0
    %172 = vmatpush1.bf16.msra.mxu0 0
    %173 = vmatprep.subr.bf16.mxu0 0
    %174 = vmatpush1.bf16.msra.mxu0 0
    %175 = vmatprep.mubr.bf16.mxu0 0
    %176 = vmatmul.mubr.bf16.gmra.mrb[0].mxu0 %v141
    %v177 = vpop.f32.mrb[0].mxu0
    %v178 = vadd.f32 0.0, %v177
    %v179 = vpop.f32.mrb[0].mxu0
    %v180 = vadd.f32 0.0, %v179
    %v181 = vpop.f32.mrb[0].mxu0
    %v182 = vadd.f32 0.0, %v181
    %v183 = vpop.f32.mrb[0].mxu0
    %v184 = vadd.f32 0.0, %v183
    %185 = vdwg.mxu0
    %186 = vmatprep.subr.bf16.mxu0 %v119
    %187 = vmatpush1.bf16.msra.mxu0 %v118
    %188 = vmatprep.subr.bf16.mxu0 %v125
    %189 = vmatpush1.bf16.msra.mxu0 %v124
    %190 = vmatprep.subr.bf16.mxu0 0
    %191 = vmatpush1.bf16.msra.mxu0 0
    %192 = vmatprep.subr.bf16.mxu0 0
    %193 = vmatpush1.bf16.msra.mxu0 0
    %194 = vmatprep.subr.bf16.mxu0 0
    %195 = vmatpush1.bf16.msra.mxu0 0
    %196 = vmatprep.subr.bf16.mxu0 0
    %197 = vmatpush1.bf16.msra.mxu0 0
    %198 = vmatprep.subr.bf16.mxu0 0
    %199 = vmatpush1.bf16.msra.mxu0 0
    %200 = vmatprep.subr.bf16.mxu0 0
    %201 = vmatpush1.bf16.msra.mxu0 0
    %202 = vmatprep.subr.bf16.mxu0 0
    %203 = vmatpush1.bf16.msra.mxu0 0
    %204 = vmatprep.subr.bf16.mxu0 0
    %205 = vmatpush1.bf16.msra.mxu0 0
    %206 = vmatprep.subr.bf16.mxu0 0
    %207 = vmatpush1.bf16.msra.mxu0 0
    %208 = vmatprep.subr.bf16.mxu0 0
    %209 = vmatpush1.bf16.msra.mxu0 0
    %210 = vmatprep.subr.bf16.mxu0 0
    %211 = vmatpush1.bf16.msra.mxu0 0
    %212 = vmatprep.subr.bf16.mxu0 0
    %213 = vmatpush1.bf16.msra.mxu0 0
    %214 = vmatprep.subr.bf16.mxu0 0
    %215 = vmatpush1.bf16.msra.mxu0 0
    %216 = vmatprep.subr.bf16.mxu0 0
    %217 = vmatpush1.bf16.msra.mxu0 0
    %218 = vmatprep.mubr.bf16.mxu0 0
    %219 = vmatmul.mubr.bf16.gmra.mrb[0].mxu0 %v141
    %v220 = vpop.f32.mrb[0].mxu0
    %v221 = vadd.f32 0.0, %v220
    %v222 = vpop.f32.mrb[0].mxu0
    %v223 = vadd.f32 0.0, %v222
    %v224 = vpop.f32.mrb[0].mxu0
    %v225 = vadd.f32 0.0, %v224
    %v226 = vpop.f32.mrb[0].mxu0
    %v227 = vadd.f32 0.0, %v226
    %228 = vdwg.mxu0
    %229 = vmatprep.subr.bf16.mxu0 %v121
    %230 = vmatpush1.bf16.msra.mxu0 %v120
    %231 = vmatprep.subr.bf16.mxu0 %v127
    %232 = vmatpush1.bf16.msra.mxu0 %v126
    %233 = vmatprep.subr.bf16.mxu0 0
    %234 = vmatpush1.bf16.msra.mxu0 0
    %235 = vmatprep.subr.bf16.mxu0 0
    %236 = vmatpush1.bf16.msra.mxu0 0
    %237 = vmatprep.subr.bf16.mxu0 0
    %238 = vmatpush1.bf16.msra.mxu0 0
    %239 = vmatprep.subr.bf16.mxu0 0
    %240 = vmatpush1.bf16.msra.mxu0 0
    %241 = vmatprep.subr.bf16.mxu0 0
    %242 = vmatpush1.bf16.msra.mxu0 0
    %243 = vmatprep.subr.bf16.mxu0 0
    %244 = vmatpush1.bf16.msra.mxu0 0
    %245 = vmatprep.subr.bf16.mxu0 0
    %246 = vmatpush1.bf16.msra.mxu0 0
    %247 = vmatprep.subr.bf16.mxu0 0
    %248 = vmatpush1.bf16.msra.mxu0 0
    %249 = vmatprep.subr.bf16.mxu0 0
    %250 = vmatpush1.bf16.msra.mxu0 0
    %251 = vmatprep.subr.bf16.mxu0 0
    %252 = vmatpush1.bf16.msra.mxu0 0
    %253 = vmatprep.subr.bf16.mxu0 0
    %254 = vmatpush1.bf16.msra.mxu0 0
    %255 = vmatprep.subr.bf16.mxu0 0
    %256 = vmatpush1.bf16.msra.mxu0 0
    %257 = vmatprep.subr.bf16.mxu0 0
    %258 = vmatpush1.bf16.msra.mxu0 0
    %259 = vmatprep.subr.bf16.mxu0 0
    %260 = vmatpush1.bf16.msra.mxu0 0
    %261 = vmatprep.mubr.bf16.mxu0 0
    %262 = vmatmul.mubr.bf16.gmra.mrb[0].mxu0 %v141
    %v263 = vpop.f32.mrb[0].mxu0
    %v264 = vadd.f32 0.0, %v263
    %v265 = vpop.f32.mrb[0].mxu0
    %v266 = vadd.f32 0.0, %v265
    %v267 = vpop.f32.mrb[0].mxu0
    %v268 = vadd.f32 0.0, %v267
    %v269 = vpop.f32.mrb[0].mxu0
    %v270 = vadd.f32 0.0, %v269
    %271 = vdwg.mxu0
    %v272 = vmul.f32 %v178, %v65
    %v273 = vmul.f32 %v180, %v65
    %v274 = vmul.f32 %v221, %v65
    %v275 = vmul.f32 %v182, %v66
    %v276 = vmul.f32 %v184, %v66
    %v277 = vmul.f32 %v225, %v66
    %v278 = vadd.f32 %v272, %v223
    %v279 = vadd.f32 %v273, %v264
    %v280 = vadd.f32 %v275, %v227
    %v281 = vadd.f32 %v276, %v268
    %v282 = vld [vmem:[%s2] sm:$0x3]
    %v284 = vlaneseq
    %v285 = vshrl.u32 %v284, 7
    %v286 = vsub.s32 0, %v285
    %v287 = vrot.slane %v282, %v286
    %v288 = vlaneseq
    %v289 = vshrl.u32 %v288, 7
    %v290 = vsub.s32 1, %v289
    %v291 = vrot.slane %v282, %v290
    %v294 = vadd.f32 %v278, %v287
    %v295 = vadd.f32 %v279, %v291
    %v296 = vadd.f32 %v280, %v287
    %v297 = vadd.f32 %v281, %v291
    %v298 = vxor.u32 %v294, 2147483648
    %v299 = vxor.u32 %v295, 2147483648
    %v300 = vxor.u32 %v296, 2147483648
    %v301 = vxor.u32 %v297, 2147483648
    %v302 = vmul.f32 %v298, 1.442695
    %v303 = vpow.pop %v302
    %v304 = vmul.f32 %v299, 1.442695
    %v305 = vpow.pop %v304
    %v306 = vmul.f32 %v300, 1.442695
    %v307 = vpow.pop %v306
    %v308 = vmul.f32 %v301, 1.442695
    %v309 = vpow.pop %v308
    %v310 = vadd.f32 %v303, 1.0
    %v311 = vadd.f32 %v305, 1.0
    %v312 = vadd.f32 %v307, 1.0
    %v313 = vadd.f32 %v309, 1.0
    %v314 = vrcp.pop %v310
    %v315 = vmul.f32 1.0, %v314
    %v316 = vrcp.pop %v311
    %v317 = vmul.f32 1.0, %v316
    %v318 = vrcp.pop %v312
    %v319 = vmul.f32 1.0, %v318
    %v320 = vrcp.pop %v313
    %v321 = vmul.f32 1.0, %v320
    %v322 = vld [vmem:[%s3] sm:$0x1]
    %v324 = vlaneseq
    %v325 = vshrl.u32 %v324, 7
    %v326 = vsub.s32 0, %v325
    %v327 = vrot.slane %v322, %v326
    %v329 = vadd.f32 %v274, %v327
    %v330 = vadd.f32 %v277, %v327
    %v331 = vld [vmem:[%s4] sm:$0x1]
    %v333 = vlaneseq
    %v334 = vshrl.u32 %v333, 7
    %v335 = vsub.s32 0, %v334
    %v336 = vrot.slane %v331, %v335
    %v338 = vadd.f32 %v266, %v336
    %v339 = vadd.f32 %v270, %v336
    %v340 = vmul.f32 %v315, %v338
    %v341 = vmul.f32 %v319, %v339
    %v342 = vadd.f32 %v329, %v340
    %v343 = vadd.f32 %v330, %v341
    %v344 = vtanh.pop %v342
    %v345 = vtanh.pop %v343
    %v346 = vsub.f32 %v50, %v344
    %v347 = vsub.f32 %v51, %v345
    %v348 = vmul.f32 %v317, %v346
    %v349 = vmul.f32 %v321, %v347
    %v350 = vadd.f32 %v344, %v348
    %v351 = vadd.f32 %v345, %v349
    %352 = vst.msk [vmem:[#allocation7] sm:$0xff] %vm54, %v350
    %353 = vst.msk [vmem:[#allocation7 + $0x8] sm:$0xff] %vm54, %v351
    // Predicated region
    $region30: #{tpu_custom_call.1} parent=1 // pred_check
      _
    $region31: #{tpu_custom_call.1} parent=1 // pred_check_branch
      %355 = sbr.rel (0) target = $region33
    $region32: #{tpu_custom_call.1} parent=1 // pred_region
      %s357 = ssub.s32 256, 256
      %358 = vsyncadd [#allocation4], %s357
      %s359 = sshll.u32 [#allocation7], 4
      %s360 = int_to_ptr.vmem [resolvable:$true] %s359
      %365 = dma.vmem_to_hbm [thread:$0]  %s360, 256, %s5, [#allocation4], 128, 128, 8
    $region33: #{tpu_custom_call.1} parent=1 // pred_fallthru
      _
    // Predicated region
    $region34: #{tpu_custom_call.1} parent=1 // pred_check
      _
    $region35: #{tpu_custom_call.1} parent=1 // pred_check_branch
      %367 = sbr.rel (0) target = $region37
    $region36: #{tpu_custom_call.1} parent=1 // pred_region
      %368 = dma.done [#allocation4], 256
    $region37: #{tpu_custom_call.1} parent=1 // pred_fallthru
      _
    %369 = vsyncpa [#allocation3], 1
    %370 = vsyncpa [#allocation6], 1
    %371 = vsyncpa [#allocation4], 1

// kernel: tpu_custom_call.1
$region0: #{tpu_custom_call.1}
  #allocation0 [shape = 'u32[]', space=smem, size = 0x4, offset = 0x4, fixed_abs, tag = 'smem constant byte address 0x4 - core index']
  #allocation1 [shape = 'u32[144,128]{1,0:T(1,128)}', space=vmem, size = 0x12000, scoped, tag = 'internal scratch']
  %s0 = inlined_call_operand.hbm [shape: f32[16,32], index: 0, kind: input, shape index: {}]
  %s1 = inlined_call_operand.hbm [shape: bf16[32,768], index: 1, kind: input, shape index: {}]
  %s2 = inlined_call_operand.vmem [shape: f32[1,256], index: 2, kind: input, shape index: {}]
  %s3 = inlined_call_operand.vmem [shape: f32[1,128], index: 3, kind: input, shape index: {}]
  %s4 = inlined_call_operand.vmem [shape: f32[1,128], index: 4, kind: input, shape index: {}]
  %s5 = inlined_call_operand.hbm [shape: f32[16,32], index: 5, kind: output, shape index: {}]
  %s6 = sld [smem:[#allocation0]]
  $region38: #{tpu_custom_call.1} parent=0
    _
  %s8 = ssub.s32 1, %s6
  %s9 = scalar_select 0, %s8, %s6
  $region1: #{tpu_custom_call.1} parent=0
    #allocation2 [shape = 'u8[8192]{0}', space=vmem, size = 0x2000, scoped, tag = 'input window, operand 0, single buffered']
    #allocation3 [shape = 's32[1]{0}', space=sflag, size = 0x4, scoped, tag = 'scoped memory for tpu_custom_call.1']
    #allocation4 [shape = 's32[1]{0}', space=sflag, size = 0x4, scoped, tag = 'scoped memory for tpu_custom_call.1']
    #allocation5 [shape = 'u8[49152]{0}', space=vmem, size = 0xc000, scoped, tag = 'input window, operand 1, single buffered']
    #allocation6 [shape = 's32[1]{0}', space=sflag, size = 0x4, scoped, tag = 'scoped memory for tpu_custom_call.1']
    #allocation7 [shape = 'u8[8192]{0}', space=vmem, size = 0x2000, scoped, tag = 'output window, operand 0, single buffered']
    %10 = vsyncpa [#allocation3], 0
    %11 = vsyncpa [#allocation6], 0
    %12 = vsyncpa [#allocation4], 0
    // Predicated region
    $region2: #{tpu_custom_call.1} parent=1 // pred_check
      _
    $region3: #{tpu_custom_call.1} parent=1 // pred_check_branch
      %14 = sbr.rel (0) target = $region5
    $region4: #{tpu_custom_call.1} parent=1 // pred_region
      %s16 = ssub.s32 256, 256
      %17 = vsyncadd [#allocation3], %s16
      %s18 = sshll.u32 [#allocation2], 4
      %s19 = int_to_ptr.vmem [resolvable:$true] %s18
      %24 = dma.hbm_to_vmem [thread:$0]  %s0, 256, %s19, [#allocation3], 128, 128, 8
    $region5: #{tpu_custom_call.1} parent=1 // pred_fallthru
      _
    // Predicated region
    $region6: #{tpu_custom_call.1} parent=1 // pred_check
      _
    $region7: #{tpu_custom_call.1} parent=1 // pred_check_branch
      %26 = sbr.rel (0) target = $region9
    $region8: #{tpu_custom_call.1} parent=1 // pred_region
      %s28 = ssub.s32 1536, 1536
      %29 = vsyncadd [#allocation6], %s28
      %s30 = sshll.u32 [#allocation5], 4
      %s31 = int_to_ptr.vmem [resolvable:$true] %s30
      %36 = dma.hbm_to_vmem [thread:$0]  %s1, 1536, %s31, [#allocation6], 384, 384, 24
    $region9: #{tpu_custom_call.1} parent=1 // pred_fallthru
      _
    // Predicated region
    $region10: #{tpu_custom_call.1} parent=1 // pred_check
      _
    $region11: #{tpu_custom_call.1} parent=1 // pred_check_branch
      %38 = sbr.rel (0) target = $region13
    $region12: #{tpu_custom_call.1} parent=1 // pred_region
      _
    $region13: #{tpu_custom_call.1} parent=1 // pred_fallthru
      _
    // Predicated region
    $region14: #{tpu_custom_call.1} parent=1 // pred_check
      _
    $region15: #{tpu_custom_call.1} parent=1 // pred_check_branch
      %40 = sbr.rel (0) target = $region17
    $region16: #{tpu_custom_call.1} parent=1 // pred_region
      _
    $region17: #{tpu_custom_call.1} parent=1 // pred_fallthru
      _
    // Predicated region
    $region18: #{tpu_custom_call.1} parent=1 // pred_check
      _
    $region19: #{tpu_custom_call.1} parent=1 // pred_check_branch
      %42 = sbr.rel (0) target = $region21
    $region20: #{tpu_custom_call.1} parent=1 // pred_region
      _
    $region21: #{tpu_custom_call.1} parent=1 // pred_fallthru
      _
    // Predicated region
    $region22: #{tpu_custom_call.1} parent=1 // pred_check
      _
    $region23: #{tpu_custom_call.1} parent=1 // pred_check_branch
      %44 = sbr.rel (0) target = $region25
    $region24: #{tpu_custom_call.1} parent=1 // pred_region
      %45 = dma.done [#allocation3], 256
    $region25: #{tpu_custom_call.1} parent=1 // pred_fallthru
      _
    // Predicated region
    $region26: #{tpu_custom_call.1} parent=1 // pred_check
      _
    $region27: #{tpu_custom_call.1} parent=1 // pred_check_branch
      %47 = sbr.rel (0) target = $region29
    $region28: #{tpu_custom_call.1} parent=1 // pred_region
      %48 = dma.done [#allocation6], 1536
    $region29: #{tpu_custom_call.1} parent=1 // pred_fallthru
      _
    %v50 = vld [vmem:[#allocation2] sm:$0xff]
    %v51 = vld [vmem:[#allocation2 + $0x8] sm:$0xff]
    %v52 = vmul.f32 %v50, %v50
    %v53 = vmul.f32 %v51, %v51
    %vm54 = vcmask 261120
    %v55 = vsel %vm54, %v52, 0.0
    %56 = vadd.xlane.f32.xlu0 %v55
    %v57 = vpop.xlane.xlu0 %56
    %v58 = vsel %vm54, %v53, 0.0
    %59 = vadd.xlane.f32.xlu0 %v58
    %v60 = vpop.xlane.xlu0 %59
    %v61 = vmul.f32 %v57, 0.03125
    %v62 = vmul.f32 %v60, 0.03125
    %v63 = vmax.f32 %v61, 1e-16
    %v64 = vmax.f32 %v62, 1e-16
    %v65 = vrsqrt.pop %v63
    %v66 = vrsqrt.pop %v64
    %v67 = vpack.c.bf16 %v51, %v50
    %v68 = vld [vmem:[#allocation5] sm:$0xff]
    %v69 = vld [vmem:[#allocation5 + $0x8] sm:$0xff]
    %v70 = vld [vmem:[#allocation5 + $0x10] sm:$0xff]
    %v71 = vld [vmem:[#allocation5 + $0x18] sm:$0xff]
    %v72 = vld [vmem:[#allocation5 + $0x20] sm:$0xff]
    %v73 = vld [vmem:[#allocation5 + $0x28] sm:$0xff]
    %v74 = vld [vmem:[#allocation5 + $0x30] sm:$0xff]
    %v75 = vld [vmem:[#allocation5 + $0x38] sm:$0xff]
    %v76 = vld [vmem:[#allocation5 + $0x40] sm:$0xff]
    %v77 = vld [vmem:[#allocation5 + $0x48] sm:$0xff]
    %v78 = vld [vmem:[#allocation5 + $0x50] sm:$0xff]
    %v79 = vld [vmem:[#allocation5 + $0x58] sm:$0xff]
    %v92 = vunpack.c.l.b16 %v68
    %v93 = vunpack.c.h.b16 %v68
    %v94 = vunpack.c.l.b16 %v69
    %v95 = vunpack.c.h.b16 %v69
    %v96 = vunpack.c.l.b16 %v70
    %v97 = vunpack.c.h.b16 %v70
    %v98 = vunpack.c.l.b16 %v71
    %v99 = vunpack.c.h.b16 %v71
    %v100 = vunpack.c.l.b16 %v72
    %v101 = vunpack.c.h.b16 %v72
    %v102 = vunpack.c.l.b16 %v73
    %v103 = vunpack.c.h.b16 %v73
    %v104 = vunpack.c.l.b16 %v74
    %v105 = vunpack.c.h.b16 %v74
    %v106 = vunpack.c.l.b16 %v75
    %v107 = vunpack.c.h.b16 %v75
    %v108 = vunpack.c.l.b16 %v76
    %v109 = vunpack.c.h.b16 %v76
    %v110 = vunpack.c.l.b16 %v77
    %v111 = vunpack.c.h.b16 %v77
    %v112 = vunpack.c.l.b16 %v78
    %v113 = vunpack.c.h.b16 %v78
    %v114 = vunpack.c.l.b16 %v79
    %v115 = vunpack.c.h.b16 %v79
    %v116 = vpack.c.b16 %v98, %v92
    %v117 = vpack.c.b16 %v99, %v93
    %v118 = vpack.c.b16 %v100, %v94
    %v119 = vpack.c.b16 %v101, %v95
    %v120 = vpack.c.b16 %v102, %v96
    %v121 = vpack.c.b16 %v103, %v97
    %v122 = vpack.c.b16 %v110, %v104
    %v123 = vpack.c.b16 %v111, %v105
    %v124 = vpack.c.b16 %v112, %v106
    %v125 = vpack.c.b16 %v113, %v107
    %v126 = vpack.c.b16 %v114, %v108
    %v127 = vpack.c.b16 %v115, %v109
    %v141 = vsel %vm54, %v67, 0
    %143 = vmatprep.subr.bf16.mxu0 %v117
    %144 = vmatpush1.bf16.msra.mxu0 %v116
    %145 = vmatprep.subr.bf16.mxu0 %v123
    %146 = vmatpush1.bf16.msra.mxu0 %v122
    %147 = vmatprep.subr.bf16.mxu0 0
    %148 = vmatpush1.bf16.msra.mxu0 0
    %149 = vmatprep.subr.bf16.mxu0 0
    %150 = vmatpush1.bf16.msra.mxu0 0
    %151 = vmatprep.subr.bf16.mxu0 0
    %152 = vmatpush1.bf16.msra.mxu0 0
    %153 = vmatprep.subr.bf16.mxu0 0
    %154 = vmatpush1.bf16.msra.mxu0 0
    %155 = vmatprep.subr.bf16.mxu0 0
    %156 = vmatpush1.bf16.msra.mxu0 0
    %157 = vmatprep.subr.bf16.mxu0 0
    %158 = vmatpush1.bf16.msra.mxu0 0
    %159 = vmatprep.subr.bf16.mxu0 0
    %160 = vmatpush1.bf16.msra.mxu0 0
    %161 = vmatprep.subr.bf16.mxu0 0
    %162 = vmatpush1.bf16.msra.mxu0 0
    %163 = vmatprep.subr.bf16.mxu0 0
    %164 = vmatpush1.bf16.msra.mxu0 0
    %165 = vmatprep.subr.bf16.mxu0 0
    %166 = vmatpush1.bf16.msra.mxu0 0
    %167 = vmatprep.subr.bf16.mxu0 0
    %168 = vmatpush1.bf16.msra.mxu0 0
    %169 = vmatprep.subr.bf16.mxu0 0
    %170 = vmatpush1.bf16.msra.mxu0 0
    %171 = vmatprep.subr.bf16.mxu0 0
    %172 = vmatpush1.bf16.msra.mxu0 0
    %173 = vmatprep.subr.bf16.mxu0 0
    %174 = vmatpush1.bf16.msra.mxu0 0
    %175 = vmatprep.mubr.bf16.mxu0 0
    %176 = vmatmul.mubr.bf16.gmra.mrb[0].mxu0 %v141
    %v177 = vpop.f32.mrb[0].mxu0
    %v178 = vadd.f32 0.0, %v177
    %v179 = vpop.f32.mrb[0].mxu0
    %v180 = vadd.f32 0.0, %v179
    %v181 = vpop.f32.mrb[0].mxu0
    %v182 = vadd.f32 0.0, %v181
    %v183 = vpop.f32.mrb[0].mxu0
    %v184 = vadd.f32 0.0, %v183
    %185 = vdwg.mxu0
    %186 = vmatprep.subr.bf16.mxu0 %v119
    %187 = vmatpush1.bf16.msra.mxu0 %v118
    %188 = vmatprep.subr.bf16.mxu0 %v125
    %189 = vmatpush1.bf16.msra.mxu0 %v124
    %190 = vmatprep.subr.bf16.mxu0 0
    %191 = vmatpush1.bf16.msra.mxu0 0
    %192 = vmatprep.subr.bf16.mxu0 0
    %193 = vmatpush1.bf16.msra.mxu0 0
    %194 = vmatprep.subr.bf16.mxu0 0
    %195 = vmatpush1.bf16.msra.mxu0 0
    %196 = vmatprep.subr.bf16.mxu0 0
    %197 = vmatpush1.bf16.msra.mxu0 0
    %198 = vmatprep.subr.bf16.mxu0 0
    %199 = vmatpush1.bf16.msra.mxu0 0
    %200 = vmatprep.subr.bf16.mxu0 0
    %201 = vmatpush1.bf16.msra.mxu0 0
    %202 = vmatprep.subr.bf16.mxu0 0
    %203 = vmatpush1.bf16.msra.mxu0 0
    %204 = vmatprep.subr.bf16.mxu0 0
    %205 = vmatpush1.bf16.msra.mxu0 0
    %206 = vmatprep.subr.bf16.mxu0 0
    %207 = vmatpush1.bf16.msra.mxu0 0
    %208 = vmatprep.subr.bf16.mxu0 0
    %209 = vmatpush1.bf16.msra.mxu0 0
    %210 = vmatprep.subr.bf16.mxu0 0
    %211 = vmatpush1.bf16.msra.mxu0 0
    %212 = vmatprep.subr.bf16.mxu0 0
    %213 = vmatpush1.bf16.msra.mxu0 0
    %214 = vmatprep.subr.bf16.mxu0 0
    %215 = vmatpush1.bf16.msra.mxu0 0
    %216 = vmatprep.subr.bf16.mxu0 0
    %217 = vmatpush1.bf16.msra.mxu0 0
    %218 = vmatprep.mubr.bf16.mxu0 0
    %219 = vmatmul.mubr.bf16.gmra.mrb[0].mxu0 %v141
    %v220 = vpop.f32.mrb[0].mxu0
    %v221 = vadd.f32 0.0, %v220
    %v222 = vpop.f32.mrb[0].mxu0
    %v223 = vadd.f32 0.0, %v222
    %v224 = vpop.f32.mrb[0].mxu0
    %v225 = vadd.f32 0.0, %v224
    %v226 = vpop.f32.mrb[0].mxu0
    %v227 = vadd.f32 0.0, %v226
    %228 = vdwg.mxu0
    %229 = vmatprep.subr.bf16.mxu0 %v121
    %230 = vmatpush1.bf16.msra.mxu0 %v120
    %231 = vmatprep.subr.bf16.mxu0 %v127
    %232 = vmatpush1.bf16.msra.mxu0 %v126
    %233 = vmatprep.subr.bf16.mxu0 0
    %234 = vmatpush1.bf16.msra.mxu0 0
    %235 = vmatprep.subr.bf16.mxu0 0
    %236 = vmatpush1.bf16.msra.mxu0 0
    %237 = vmatprep.subr.bf16.mxu0 0
    %238 = vmatpush1.bf16.msra.mxu0 0
    %239 = vmatprep.subr.bf16.mxu0 0
    %240 = vmatpush1.bf16.msra.mxu0 0
    %241 = vmatprep.subr.bf16.mxu0 0
    %242 = vmatpush1.bf16.msra.mxu0 0
    %243 = vmatprep.subr.bf16.mxu0 0
    %244 = vmatpush1.bf16.msra.mxu0 0
    %245 = vmatprep.subr.bf16.mxu0 0
    %246 = vmatpush1.bf16.msra.mxu0 0
    %247 = vmatprep.subr.bf16.mxu0 0
    %248 = vmatpush1.bf16.msra.mxu0 0
    %249 = vmatprep.subr.bf16.mxu0 0
    %250 = vmatpush1.bf16.msra.mxu0 0
    %251 = vmatprep.subr.bf16.mxu0 0
    %252 = vmatpush1.bf16.msra.mxu0 0
    %253 = vmatprep.subr.bf16.mxu0 0
    %254 = vmatpush1.bf16.msra.mxu0 0
    %255 = vmatprep.subr.bf16.mxu0 0
    %256 = vmatpush1.bf16.msra.mxu0 0
    %257 = vmatprep.subr.bf16.mxu0 0
    %258 = vmatpush1.bf16.msra.mxu0 0
    %259 = vmatprep.subr.bf16.mxu0 0
    %260 = vmatpush1.bf16.msra.mxu0 0
    %261 = vmatprep.mubr.bf16.mxu0 0
    %262 = vmatmul.mubr.bf16.gmra.mrb[0].mxu0 %v141
    %v263 = vpop.f32.mrb[0].mxu0
    %v264 = vadd.f32 0.0, %v263
    %v265 = vpop.f32.mrb[0].mxu0
    %v266 = vadd.f32 0.0, %v265
    %v267 = vpop.f32.mrb[0].mxu0
    %v268 = vadd.f32 0.0, %v267
    %v269 = vpop.f32.mrb[0].mxu0
    %v270 = vadd.f32 0.0, %v269
    %271 = vdwg.mxu0
    %v272 = vmul.f32 %v178, %v65
    %v273 = vmul.f32 %v180, %v65
    %v274 = vmul.f32 %v221, %v65
    %v275 = vmul.f32 %v182, %v66
    %v276 = vmul.f32 %v184, %v66
    %v277 = vmul.f32 %v225, %v66
    %v278 = vadd.f32 %v272, %v223
    %v279 = vadd.f32 %v273, %v264
    %v280 = vadd.f32 %v275, %v227
    %v281 = vadd.f32 %v276, %v268
    %v282 = vld [vmem:[%s2] sm:$0x3]
    %v284 = vlaneseq
    %v285 = vshrl.u32 %v284, 7
    %v286 = vsub.s32 0, %v285
    %v287 = vrot.slane %v282, %v286
    %v288 = vlaneseq
    %v289 = vshrl.u32 %v288, 7
    %v290 = vsub.s32 1, %v289
    %v291 = vrot.slane %v282, %v290
    %v294 = vadd.f32 %v278, %v287
    %v295 = vadd.f32 %v279, %v291
    %v296 = vadd.f32 %v280, %v287
    %v297 = vadd.f32 %v281, %v291
    %v298 = vxor.u32 %v294, 2147483648
    %v299 = vxor.u32 %v295, 2147483648
    %v300 = vxor.u32 %v296, 2147483648
    %v301 = vxor.u32 %v297, 2147483648
    %v302 = vmul.f32 %v298, 1.442695
    %v303 = vpow.pop %v302
    %v304 = vmul.f32 %v299, 1.442695
    %v305 = vpow.pop %v304
    %v306 = vmul.f32 %v300, 1.442695
    %v307 = vpow.pop %v306
    %v308 = vmul.f32 %v301, 1.442695
    %v309 = vpow.pop %v308
    %v310 = vadd.f32 %v303, 1.0
    %v311 = vadd.f32 %v305, 1.0
    %v312 = vadd.f32 %v307, 1.0
    %v313 = vadd.f32 %v309, 1.0
    %v314 = vrcp.pop %v310
    %v315 = vmul.f32 1.0, %v314
    %v316 = vrcp.pop %v311
    %v317 = vmul.f32 1.0, %v316
    %v318 = vrcp.pop %v312
    %v319 = vmul.f32 1.0, %v318
    %v320 = vrcp.pop %v313
    %v321 = vmul.f32 1.0, %v320
    %v322 = vld [vmem:[%s3] sm:$0x1]
    %v324 = vlaneseq
    %v325 = vshrl.u32 %v324, 7
    %v326 = vsub.s32 0, %v325
    %v327 = vrot.slane %v322, %v326
    %v329 = vadd.f32 %v274, %v327
    %v330 = vadd.f32 %v277, %v327
    %v331 = vld [vmem:[%s4] sm:$0x1]
    %v333 = vlaneseq
    %v334 = vshrl.u32 %v333, 7
    %v335 = vsub.s32 0, %v334
    %v336 = vrot.slane %v331, %v335
    %v338 = vadd.f32 %v266, %v336
    %v339 = vadd.f32 %v270, %v336
    %v340 = vmul.f32 %v315, %v338
    %v341 = vmul.f32 %v319, %v339
    %v342 = vadd.f32 %v329, %v340
    %v343 = vadd.f32 %v330, %v341
    %v344 = vtanh.pop %v342
    %v345 = vtanh.pop %v343
    %v346 = vsub.f32 %v50, %v344
    %v347 = vsub.f32 %v51, %v345
    %v348 = vmul.f32 %v317, %v346
    %v349 = vmul.f32 %v321, %v347
    %v350 = vadd.f32 %v344, %v348
    %v351 = vadd.f32 %v345, %v349
    %352 = vst.msk [vmem:[#allocation7] sm:$0xff] %vm54, %v350
    %353 = vst.msk [vmem:[#allocation7 + $0x8] sm:$0xff] %vm54, %v351
    // Predicated region
    $region30: #{tpu_custom_call.1} parent=1 // pred_check
      _
    $region31: #{tpu_custom_call.1} parent=1 // pred_check_branch
      %355 = sbr.rel (0) target = $region33
    $region32: #{tpu_custom_call.1} parent=1 // pred_region
      %s357 = ssub.s32 256, 256
      %358 = vsyncadd [#allocation4], %s357
      %s359 = sshll.u32 [#allocation7], 4
      %s360 = int_to_ptr.vmem [resolvable:$true] %s359
      %365 = dma.vmem_to_hbm [thread:$0]  %s360, 256, %s5, [#allocation4], 128, 128, 8
    $region33: #{tpu_custom_call.1} parent=1 // pred_fallthru
      _
    // Predicated region
    $region34: #{tpu_custom_call.1} parent=1 // pred_check
      _
    $region35: #{tpu_custom_call.1} parent=1 // pred_check_branch
      %367 = sbr.rel (0) target = $region37
    $region36: #{tpu_custom_call.1} parent=1 // pred_region
      %368 = dma.done [#allocation4], 256
    $region37: #{tpu_custom_call.1} parent=1 // pred_fallthru
      _
    %369 = vsyncpa [#allocation3], 1
    %370 = vsyncpa [#allocation6], 1
    %371 = vsyncpa [#allocation4], 1

</llo_original>
